<compile_context>
chip_gen: v5e
topology: v5e:2x2
jax: 0.10.0
libtpu: 0.0.40
codegen_flags: <defaults>
</compile_context>

<pallas_src>
import numpy as np
import jax
import jax.numpy as jnp
from jax.experimental import pallas as pl
from jax.experimental.pallas import tpu as pltpu


_TARGET_BLOCK_BYTES = 2 * 1024 * 1024      # per-block f32 budget; ~4 live buffers ≈ 8 MiB
_VMEM_LIMIT_BYTES = 32 * 1024 * 1024       # safe on v5e/v6e (128 MiB) and v7x (64 MiB)


# -----------------------------------------------------------------------------
# Kernels
# -----------------------------------------------------------------------------
def _softmax_rows_kernel(x_ref, inv_t_ref, out_ref):
    """softmax over the last (lane) axis.  x_ref/out_ref: (block_rows, N) VMEM,
    inv_t_ref: (1, 1) SMEM scalar = 1/T."""
    x = x_ref[...].astype(jnp.float32)
    m = jnp.max(x, axis=-1, keepdims=True)
    # softmax(x/T) == exp((x - max x) / T) / sum(...)  — fold T into the exp argument.
    e = jnp.exp((x - m) * inv_t_ref[0, 0])
    s = jnp.sum(e, axis=-1, keepdims=True)
    out_ref[...] = (e / s).astype(out_ref.dtype)       # exact divide (parity w/ nn.Softmax)


def _softmax_cols_kernel(xt_ref, inv_t_ref, out_ref):
    """Transposed small-N path: xt_ref/out_ref: (N, block_cols) with the batch on the
    128-lane axis; softmax reduces over axis 0 (sublanes)."""
    x = xt_ref[...].astype(jnp.float32)
    m = jnp.max(x, axis=0, keepdims=True)
    e = jnp.exp((x - m) * inv_t_ref[0, 0])
    s = jnp.sum(e, axis=0, keepdims=True)
    out_ref[...] = (e / s).astype(out_ref.dtype)


# -----------------------------------------------------------------------------
# Tile-size heuristics (byte budget + minimum grid length)
# -----------------------------------------------------------------------------
def _round_up(v: int, m: int) -> int:
    return ((v + m - 1) // m) * m


def _pick_block_rows(B: int, N: int) -> int:
    # Multiple of 8 (sublane tiling), bounded by the byte budget, and small enough that
    # the grid has >= ~4 steps (pipelining; even split for v7x's 2 TCs) when B allows it.
    rows_by_bytes = max(8, (_TARGET_BLOCK_BYTES // (N * 4)) // 8 * 8)
    rows_by_grid = max(8, _round_up(-(-B // 4), 8))
    rows = min(rows_by_bytes, rows_by_grid)
    return B if rows >= B else rows


def _pick_block_cols(N: int, B: int) -> int:
    # Batch entries sit on the lane axis -> multiple of 128 (or the full batch).
    cols_by_bytes = max(128, (_TARGET_BLOCK_BYTES // (N * 4)) // 128 * 128)
    cols_by_grid = max(128, _round_up(-(-B // 4), 128))
    cols = min(cols_by_bytes, cols_by_grid)
    return B if cols >= B else cols


# -----------------------------------------------------------------------------
# Fused temperature softmax:  softmax(x * inv_t, axis=1)
# -----------------------------------------------------------------------------
@jax.jit
def _softmax_temp(x, inv_t_2d):
    """x: (B, N), inv_t_2d: (1, 1) float32 holding 1/T."""
    B, N = x.shape
    compiler_params = pltpu.CompilerParams(
        dimension_semantics=("parallel",),
        vmem_limit_bytes=_VMEM_LIMIT_BYTES,
    )

    if N >= 128:
        # Lane-dense rows: softmax axis on the 128-lane axis, row-tiled grid.
        block_rows = _pick_block_rows(B, N)
        grid = (pl.cdiv(B, block_rows),)          # partial tail block is fine (per-row op)
        return pl.pallas_call(
            _softmax_rows_kernel,
            out_shape=jax.ShapeDtypeStruct((B, N), x.dtype),
            grid_spec=pltpu.PrefetchScalarGridSpec(
                num_scalar_prefetch=0,
                grid=grid,
                in_specs=[
                    pl.BlockSpec((block_rows, N), lambda i: (i, 0)),
                    pl.BlockSpec(memory_space=pltpu.MemorySpace.SMEM),   # 1/T scalar
                ],
                out_specs=pl.BlockSpec((block_rows, N), lambda i: (i, 0)),
            ),
            compiler_params=compiler_params,
        )(x, inv_t_2d)

    # Small-N (action-logit) path: present transposed so the batch is lane-dense and the
    # softmax reduces over <= N sublanes; stores are full-lane instead of masked vst.
    xt = x.T                                     # (N, B) layout plumbing in the wrapper
    block_cols = _pick_block_cols(N, B)
    grid = (pl.cdiv(B, block_cols),)
    out_t = pl.pallas_call(
        _softmax_cols_kernel,
        out_shape=jax.ShapeDtypeStruct((N, B), x.dtype),
        grid_spec=pltpu.PrefetchScalarGridSpec(
            num_scalar_prefetch=0,
            grid=grid,
            in_specs=[
                pl.BlockSpec((N, block_cols), lambda j: (0, j)),
                pl.BlockSpec(memory_space=pltpu.MemorySpace.SMEM),       # 1/T scalar
            ],
            out_specs=pl.BlockSpec((N, block_cols), lambda j: (0, j)),
        ),
        compiler_params=compiler_params,
    )(xt, inv_t_2d)
    return out_t.T


# -----------------------------------------------------------------------------
# Thin Python wrapper mirroring the PyTorch module's host-side state machine.
# -----------------------------------------------------------------------------
class SimulatedAnnealing:
    def __init__(self, t_start: float, cooling_steps: int):
        self.schedule = np.linspace(t_start, 1, cooling_steps)
        self.step_count = 0
        self.cooling_steps = cooling_steps
        self.function = self._cooled
        self.done = True

    def __call__(self, x):
        return self.forward(x)

    def forward(self, x):
        return self.function(x)

    def step(self):
        # TODO(synk): host-side schedule bookkeeping only; no tensor work to kernelize.
        if self.done:
            return
        self.step_count += 1
        if self.step_count == self.cooling_steps:
            self.function = self._cooled
            self.done = True
            print("--SIMULATED ANNEALING FINISHED--")

    def _annealing(self, x):
        temp = float(self.schedule[self.step_count])
        inv_t = jnp.full((1, 1), 1.0 / temp, dtype=jnp.float32)
        return _softmax_temp(x, inv_t)

    def _cooled(self, x):
        inv_t = jnp.ones((1, 1), dtype=jnp.float32)     # x / 1
        return _softmax_temp(x, inv_t)


if __name__ == "__main__":
    key = jax.random.PRNGKey(0)
    k1, k2, k3, k4 = jax.random.split(key, 4)
    ones = jnp.ones((1, 1), jnp.float32)

    model = SimulatedAnnealing(t_start=4.0, cooling_steps=10)

    # Action-logit shaped input as used with this module in a2c: (batch=2, n_actions=3).
    x = jax.random.normal(k1, (2, 3), dtype=jnp.float32)
    probs = model(x)                                    # cooled path: softmax(x / 1)
    jax.block_until_ready(probs)
    ref = jax.nn.softmax(x, axis=1)
    assert probs.shape == x.shape
    assert bool(jnp.all(jnp.abs(jnp.sum(probs, axis=1) - 1.0) < 2e-3))
    assert bool(jnp.max(jnp.abs(probs - ref)) < 2e-3)

    # Exercise the annealing branch (temperature != 1) on the same fused kernel.
    model.done = False
    model.step_count = 0
    model.function = model._annealing
    probs_hot = model(x)
    jax.block_until_ready(probs_hot)
    ref_hot = jax.nn.softmax(x / float(model.schedule[0]), axis=1)
    assert bool(jnp.max(jnp.abs(probs_hot - ref_hot)) < 2e-3)

    # Lane-dense rows path (N >= 128), multi-step grid.
    x2 = jax.random.normal(k2, (16, 128), dtype=jnp.float32)
    probs2 = _softmax_temp(x2, ones)
    jax.block_until_ready(probs2)
    assert bool(jnp.max(jnp.abs(probs2 - jax.nn.softmax(x2, axis=1))) < 2e-3)

    # Rows path with a non-dividing batch (partial tail block via pl.cdiv grid).
    x3 = jax.random.normal(k3, (20, 256), dtype=jnp.float32)
    probs3 = _softmax_temp(x3, ones)
    jax.block_until_ready(probs3)
    assert bool(jnp.max(jnp.abs(probs3 - jax.nn.softmax(x3, axis=1))) < 2e-3)

    # Transposed small-N path with a multi-step, non-dividing column grid.
    x4 = jax.random.normal(k4, (200, 3), dtype=jnp.float32)
    probs4 = _softmax_temp(x4, ones)
    jax.block_until_ready(probs4)
    assert bool(jnp.max(jnp.abs(probs4 - jax.nn.softmax(x4, axis=1))) < 2e-3)

    print("KERNEL_OK")
</pallas_src>

<mosaic_0001>
module attributes {stable_mosaic.version = 11 : i64} {
  func.func @_softmax_cols_kernel(%arg0: i32, %arg1: memref<3x2xf32, #tpu.memory_space<vmem>>, %arg2: memref<1x1xf32, #tpu.memory_space<smem>>, %arg3: memref<3x2xf32, #tpu.memory_space<vmem>>) attributes {dimension_semantics = [#tpu.dimension_semantics<parallel>], iteration_bounds = array<i64: 1>, scalar_prefetch = 0 : i64, scratch_operands = 0 : i64, tpu.core_type = #tpu.core_type<tc>, window_params = [{transform_indices = @transform_0, window_bounds = array<i64: 3, 2>}, {transform_indices = @transform_1, window_bounds = array<i64: 1, 1>}, {transform_indices = @transform_2, window_bounds = array<i64: 3, 2>}]} {
    %c0 = arith.constant 0 : index
    %c0_0 = arith.constant 0 : index
    %0 = vector.load %arg1[%c0, %c0_0] : memref<3x2xf32, #tpu.memory_space<vmem>>, vector<3x2xf32>
    %cst = arith.constant dense<0xFF800000> : vector<2xf32>
    %1 = vector.multi_reduction <maximumf>, %0, %cst [0] : vector<3x2xf32> to vector<2xf32>
    %2 = vector.shape_cast %1 : vector<2xf32> to vector<1x2xf32>
    %3 = vector.broadcast %2 : vector<1x2xf32> to vector<3x2xf32>
    %4 = arith.subf %0, %3 : vector<3x2xf32>
    %c0_1 = arith.constant 0 : index
    %c0_2 = arith.constant 0 : index
    %5 = memref.load %arg2[%c0_1, %c0_2] : memref<1x1xf32, #tpu.memory_space<smem>>
    %6 = vector.broadcast %5 : f32 to vector<3x2xf32>
    %7 = arith.mulf %4, %6 : vector<3x2xf32>
    %8 = math.exp %7 : vector<3x2xf32>
    %cst_3 = arith.constant dense<0.000000e+00> : vector<2xf32>
    %9 = vector.multi_reduction <add>, %8, %cst_3 [0] : vector<3x2xf32> to vector<2xf32>
    %10 = vector.shape_cast %9 : vector<2xf32> to vector<1x2xf32>
    %11 = vector.broadcast %10 : vector<1x2xf32> to vector<3x2xf32>
    %12 = arith.divf %8, %11 : vector<3x2xf32>
    %c0_4 = arith.constant 0 : index
    %c0_5 = arith.constant 0 : index
    %13 = vector.load %arg3[%c0_4, %c0_5] : memref<3x2xf32, #tpu.memory_space<vmem>>, vector<3x2xf32>
    tpu.vector_store %arg3[%c0_4, %c0_5], %12 {strides = array<i32>} : memref<3x2xf32, #tpu.memory_space<vmem>>, vector<3x2xf32>,
    return
  }
  func.func @transform_0(%arg0: i32) -> (i32, i32) {
    %c0_i32 = arith.constant 0 : i32
    %c0_i32_0 = arith.constant 0 : i32
    return %c0_i32, %arg0 : i32, i32
  }
  func.func @transform_1(%arg0: i32) -> (i32, i32) {
    %c0_i32 = arith.constant 0 : i32
    %c0_i32_0 = arith.constant 0 : i32
    %c0_i32_1 = arith.constant 0 : i32
    return %c0_i32, %c0_i32_0 : i32, i32
  }
  func.func @transform_2(%arg0: i32) -> (i32, i32) {
    %c0_i32 = arith.constant 0 : i32
    %c0_i32_0 = arith.constant 0 : i32
    return %c0_i32, %arg0 : i32, i32
  }
}

</mosaic_0001>

<llo_original>
// kernel: _softmax_temp.1
$region0: #{_softmax_temp.1}
  #allocation0 [shape = 'u32[]', space=smem, size = 0x4, offset = 0x4, fixed_abs, tag = 'smem constant byte address 0x4 - core index']
  #allocation1 [shape = 'u32[72,128]{1,0:T(1,128)}', space=vmem, size = 0x9000, scoped, tag = 'internal scratch']
  #allocation2 [shape = 'f32[1,1]{1,0:T(1,128)S(6)}', space=smem, size = 0x200, scoped, tag = 'scoped memory for _softmax_temp.1']
  %s0 = inlined_call_operand.vmem [shape: f32[3,2], index: 0, kind: input, shape index: {}]
  %s1 = inlined_call_operand.<no memory space> [shape: f32[1,1], index: 1, kind: input, shape index: {}]
  %s2 = inlined_call_operand.vmem [shape: f32[3,2], index: 2, kind: output, shape index: {}]
  %s3 = sld [smem:[#allocation0]]
  $region18: #{_softmax_temp.1} parent=0
    _
  %s5 = ssub.s32 1, %s3
  %s6 = scalar_select 0, %s5, %s3
  %7 = sst [smem:[#allocation2]] %s1
  // Predicated region
  $region2: #{_softmax_temp.1} parent=0 // pred_check
    _
  $region3: #{_softmax_temp.1} parent=0 // pred_check_branch
    %9 = sbr.rel (0) target = $region5
  $region4: #{_softmax_temp.1} parent=0 // pred_region
    _
  $region5: #{_softmax_temp.1} parent=0 // pred_fallthru
    _
  // Predicated region
  $region6: #{_softmax_temp.1} parent=0 // pred_check
    _
  $region7: #{_softmax_temp.1} parent=0 // pred_check_branch
    %11 = sbr.rel (0) target = $region9
  $region8: #{_softmax_temp.1} parent=0 // pred_region
    _
  $region9: #{_softmax_temp.1} parent=0 // pred_fallthru
    _
  %v12 = vld [vmem:[%s0] sm:$0x7]
  %vm13 = vcmask 10240
  %v14 = vsel %vm13, %v12, -inf
  %v15 = vrot.slane %v14, 4
  %v16 = vmax.f32 %v14, %v15
  %v17 = vrot.slane %v16, 2
  %v18 = vmax.f32 %v16, %v17
  %v19 = vrot.slane %v18, 1
  %v20 = vmax.f32 %v18, %v19
  %v21 = vsub.f32 %v12, %v20
  %s22 = sld [smem:[#allocation2]]
  %v23 = vstv %s22
  %v24 = vmul.f32 %v21, %v23
  %v25 = vmul.f32 %v24, 1.442695
  %v26 = vpow.pop %v25
  %v27 = vsel %vm13, %v26, 0.0
  %v28 = vrot.slane %v27, 4
  %v29 = vadd.f32 %v27, %v28
  %v30 = vrot.slane %v29, 2
  %v31 = vadd.f32 %v29, %v30
  %v32 = vrot.slane %v31, 1
  %v33 = vadd.f32 %v31, %v32
  %v34 = vrcp.pop %v33
  %v35 = vmul.f32 %v33, %v34
  %v36 = vsub.f32 1.0, %v35
  %v37 = vmul.f32 %v34, %v36
  %v38 = vadd.f32 %v34, %v37
  %vm39 = vweird.f32 %v33
  %vm40 = vweird.f32 %v34
  %vm41 = vmor %vm39, %vm40
  %v42 = vsel %vm41, %v34, %v38
  %v43 = vand.u32 2147483647, %v33
  %vm44 = vcmp.eq.f32.partialorder %v43, 8.507059e+37
  %v45 = vand.u32 %v33, 2147483648
  %v46 = vor.u32 1.1754944e-38, %v45
  %v47 = vsel %vm44, %v46, %v42
  %v48 = vmul.f32 %v26, %v47
  %49 = vst.msk [vmem:[%s2] sm:$0x7] %vm13, %v48
  // Predicated region
  $region10: #{_softmax_temp.1} parent=0 // pred_check
    _
  $region11: #{_softmax_temp.1} parent=0 // pred_check_branch
    %51 = sbr.rel (0) target = $region13
  $region12: #{_softmax_temp.1} parent=0 // pred_region
    _
  $region13: #{_softmax_temp.1} parent=0 // pred_fallthru
    _
  // Predicated region
  $region14: #{_softmax_temp.1} parent=0 // pred_check
    _
  $region15: #{_softmax_temp.1} parent=0 // pred_check_branch
    %53 = sbr.rel (0) target = $region17
  $region16: #{_softmax_temp.1} parent=0 // pred_region
    _
  $region17: #{_softmax_temp.1} parent=0 // pred_fallthru
    _

</llo_original>
